<compile_context>
chip_gen: v7x
topology: tpu7x:2x2x1
jax: 0.10.0
libtpu: 0.0.40
codegen_flags: <defaults>
</compile_context>

<pallas_src>
import jax
import jax.numpy as jnp
import numpy as np
from jax.experimental import pallas as pl
from jax.experimental.pallas import tpu as pltpu

BN_EPS = 1e-5


def basic_block_kernel(xpad_ref, w1_ref, b1_ref, w2_ref, b2_ref, out_ref, pad_scr):
    """One batch sample (one grid step) of the BasicBlock.

    xpad_ref: [1, H+2, (W+2)*Cin]        bf16  zero-padded input, (W,C) on lanes
    w1_ref  : [3, (W+2)*Cin, (W+2)*Cout] bf16  conv1 Toeplitz weights
                                               (BN1 scale + L/R zero-pad columns folded in)
    b1_ref  : [1, (W+2)*Cout]            f32   BN1 bias tiled over W, 0 on pad columns
    w2_ref  : [3, (W+2)*Cout, W*Cout]    bf16  conv2 Toeplitz weights (BN2 scale folded)
    b2_ref  : [1, W*Cout]                f32   BN2 bias tiled over W
    out_ref : [1, H, W*Cout]             f32
    pad_scr : [H+2, (W+2)*Cout]          f32   row-padded conv1 activation scratch
    """
    H = out_ref.shape[1]
    w_cout = out_ref.shape[2]            # W * Cout   (lane-dense output width)
    wp_cout = pad_scr.shape[1]           # (W+2) * Cout
    cout = (wp_cout - w_cout) // 2
    W = w_cout // cout
    cin = xpad_ref.shape[2] // (W + 2)

    # One aligned full-block load; everything below is cheap value slicing.
    x = xpad_ref[0].astype(jnp.float32)                  # (H+2, (W+2)*Cin)

    # ---- conv1 (+ folded BN1 scale): 3 row-shifted MXU matmuls, K=(W+2)*Cin ----
    acc1 = jnp.zeros((H, wp_cout), jnp.float32)
    for dy in range(3):
        acc1 += jnp.dot(x[dy:dy + H, :].astype(jnp.bfloat16), w1_ref[dy],
                        preferred_element_type=jnp.float32)
    h = jnp.maximum(acc1 + b1_ref[...], 0.0)             # L/R pad columns stay exactly 0

    # Row-pad the intermediate for conv2: only the 2 halo rows are zeroed.
    pad_scr[0:1, :] = jnp.zeros((1, wp_cout), jnp.float32)
    pad_scr[H + 1:H + 2, :] = jnp.zeros((1, wp_cout), jnp.float32)
    pad_scr[1:H + 1, :] = h

    # ---- conv2 (+ folded BN2 scale): 3 row-shifted matmuls ----
    acc2 = jnp.zeros((H, w_cout), jnp.float32)
    for dy in range(3):
        acc2 += jnp.dot(pad_scr[dy:dy + H, :].astype(jnp.bfloat16), w2_ref[dy],
                        preferred_element_type=jnp.float32)

    # Residual straight from the interior of the padded input (Cin == Cout).
    res = x[1:H + 1, cin:cin + w_cout]
    out_ref[0] = jnp.maximum(acc2 + b2_ref[...] + res, 0.0)


def fold_bn(gamma, beta, mean, var):
    scale = gamma / jnp.sqrt(var + BN_EPS)
    bias = beta - mean * scale
    return scale, bias


def _toeplitz_conv_weights(w_hwio, img_w, pad_out):
    """Per-dy block-Toeplitz matmul weights for a 3x3 SAME conv over the
    lane-flattened (W*C) layout.

    w_hwio : [kh, kw, Cin, Cout] (BN scale already folded in)
    returns: [kh, (img_w+2)*Cin, n_out] with
             n_out = (img_w+2)*Cout if pad_out (zero L/R pad columns built in)
                     else img_w*Cout
    """
    kh, kw, cin, cout = w_hwio.shape
    p = jnp.arange(img_w + 2)                       # padded input column
    q = jnp.arange(img_w)                           # output column
    dx = p[:, None] - q[None, :]                    # tap index feeding p -> q
    mask = (dx >= 0) & (dx < kw)
    dx_c = jnp.clip(dx, 0, kw - 1)
    mats = []
    for dy in range(kh):
        blocks = w_hwio[dy][dx_c] * mask[..., None, None]   # (W+2, W, Cin, Cout)
        t = blocks.transpose(0, 2, 1, 3).reshape((img_w + 2) * cin, img_w * cout)
        if pad_out:
            t = jnp.pad(t, ((0, 0), (cout, cout)))
        mats.append(t)
    return jnp.stack(mats, axis=0)


def basic_block_forward(x_nchw, params):
    """PyTorch-facing wrapper: NCHW in, NCHW out."""
    x = jnp.transpose(x_nchw, (0, 2, 3, 1)).astype(jnp.float32)    # -> NHWC
    N, H, W, Cin = x.shape
    Cout = params["w1"].shape[-1]
    assert Cin == Cout, "stride=1 & downsample=None requires inplanes == planes"

    s1, b1 = fold_bn(params["gamma1"], params["beta1"], params["mean1"], params["var1"])
    s2, b2 = fold_bn(params["gamma2"], params["beta2"], params["mean2"], params["var2"])

    # Fold BN scales into the conv weights; only the bias add stays in-kernel.
    w1s = params["w1"] * s1[None, None, None, :]
    w2s = params["w2"] * s2[None, None, None, :]

    wt1 = _toeplitz_conv_weights(w1s, W, pad_out=True).astype(jnp.bfloat16)
    wt2 = _toeplitz_conv_weights(w2s, W, pad_out=False).astype(jnp.bfloat16)

    b1_t = jnp.pad(jnp.tile(b1, W), (Cout, Cout)).reshape(1, (W + 2) * Cout)
    b2_t = jnp.tile(b2, W).reshape(1, W * Cout)

    # Zero-pad spatially, flatten (W, C) onto the lane axis, ship as bf16.
    xpad = jnp.pad(x, ((0, 0), (1, 1), (1, 1), (0, 0)))
    xpad = xpad.reshape(N, H + 2, (W + 2) * Cin).astype(jnp.bfloat16)

    out = pl.pallas_call(
        basic_block_kernel,
        out_shape=jax.ShapeDtypeStruct((N, H, W * Cout), jnp.float32),
        grid=(N,),
        in_specs=[
            pl.BlockSpec((1, H + 2, (W + 2) * Cin), lambda n: (n, 0, 0)),
            pl.BlockSpec((3, (W + 2) * Cin, (W + 2) * Cout), lambda n: (0, 0, 0)),
            pl.BlockSpec((1, (W + 2) * Cout), lambda n: (0, 0)),
            pl.BlockSpec((3, (W + 2) * Cout, W * Cout), lambda n: (0, 0, 0)),
            pl.BlockSpec((1, W * Cout), lambda n: (0, 0)),
        ],
        out_specs=pl.BlockSpec((1, H, W * Cout), lambda n: (n, 0, 0)),
        scratch_shapes=[pltpu.VMEM((H + 2, (W + 2) * Cout), jnp.float32)],
        compiler_params=pltpu.CompilerParams(
            dimension_semantics=("parallel",),          # megacore-shard the batch
            vmem_limit_bytes=32 * 1024 * 1024,          # explicit budget (usage ~100 KiB)
        ),
    )(xpad, wt1, b1_t, wt2, b2_t)

    return out.reshape(N, H, W, Cout).transpose(0, 3, 1, 2)        # -> NCHW


def basic_block_reference(x_nchw, params):
    """Pure-JAX reference (XLA convs) for correctness checking."""
    x = jnp.transpose(x_nchw, (0, 2, 3, 1)).astype(jnp.float32)
    dn = jax.lax.conv_dimension_numbers(x.shape, params["w1"].shape,
                                        ("NHWC", "HWIO", "NHWC"))
    s1, b1 = fold_bn(params["gamma1"], params["beta1"], params["mean1"], params["var1"])
    s2, b2 = fold_bn(params["gamma2"], params["beta2"], params["mean2"], params["var2"])

    h = jax.lax.conv_general_dilated(x, params["w1"], (1, 1), "SAME",
                                     dimension_numbers=dn)
    h = jnp.maximum(h * s1 + b1, 0.0)
    h2 = jax.lax.conv_general_dilated(h, params["w2"], (1, 1), "SAME",
                                      dimension_numbers=dn)
    h2 = h2 * s2 + b2
    out = jnp.maximum(h2 + x, 0.0)
    return out.transpose(0, 3, 1, 2)


if __name__ == "__main__":
    key = jax.random.PRNGKey(0)
    ks = jax.random.split(key, 12)

    # Shapes consistent with BasicBlock(inplanes=4, planes=4, stride=1)
    N, C, H, W = 2, 4, 16, 16
    planes = 4

    x = jax.random.normal(ks[0], (N, C, H, W), jnp.float32)

    params = {
        # conv weights, HWIO
        "w1": 0.1 * jax.random.normal(ks[1], (3, 3, C, planes), jnp.float32),
        "w2": 0.1 * jax.random.normal(ks[2], (3, 3, planes, planes), jnp.float32),
        # BN1 params + running stats
        "gamma1": 1.0 + 0.1 * jax.random.normal(ks[3], (planes,), jnp.float32),
        "beta1": 0.1 * jax.random.normal(ks[4], (planes,), jnp.float32),
        "mean1": 0.1 * jax.random.normal(ks[5], (planes,), jnp.float32),
        "var1": jax.random.uniform(ks[6], (planes,), jnp.float32, 0.5, 1.5),
        # BN2 params + running stats
        "gamma2": 1.0 + 0.1 * jax.random.normal(ks[7], (planes,), jnp.float32),
        "beta2": 0.1 * jax.random.normal(ks[8], (planes,), jnp.float32),
        "mean2": 0.1 * jax.random.normal(ks[9], (planes,), jnp.float32),
        "var2": jax.random.uniform(ks[10], (planes,), jnp.float32, 0.5, 1.5),
    }

    out = jax.block_until_ready(basic_block_forward(x, params))
    ref = jax.block_until_ready(basic_block_reference(x, params))
    np.testing.assert_allclose(np.asarray(out), np.asarray(ref),
                               atol=5e-2, rtol=5e-2)

    print("KERNEL_OK")
</pallas_src>

<mosaic_0001>
module attributes {stable_mosaic.version = 11 : i64} {
  func.func @basic_block_kernel(%arg0: i32, %arg1: memref<1x18x72xbf16, #tpu.memory_space<vmem>>, %arg2: memref<3x72x72xbf16, #tpu.memory_space<vmem>>, %arg3: memref<1x72xf32, #tpu.memory_space<vmem>>, %arg4: memref<3x72x64xbf16, #tpu.memory_space<vmem>>, %arg5: memref<1x64xf32, #tpu.memory_space<vmem>>, %arg6: memref<1x16x64xf32, #tpu.memory_space<vmem>>, %arg7: memref<18x72xf32, #tpu.memory_space<vmem>>) attributes {dimension_semantics = [#tpu.dimension_semantics<parallel>], iteration_bounds = array<i64: 2>, scalar_prefetch = 0 : i64, scratch_operands = 1 : i64, tpu.core_type = #tpu.core_type<tc>, window_params = [{transform_indices = @transform_0, window_bounds = array<i64: 1, 18, 72>}, {pipeline_mode = #tpu.pipeline_mode<synchronous>, transform_indices = @transform_1, window_bounds = array<i64: 3, 72, 72>}, {pipeline_mode = #tpu.pipeline_mode<synchronous>, transform_indices = @transform_2, window_bounds = array<i64: 1, 72>}, {pipeline_mode = #tpu.pipeline_mode<synchronous>, transform_indices = @transform_3, window_bounds = array<i64: 3, 72, 64>}, {pipeline_mode = #tpu.pipeline_mode<synchronous>, transform_indices = @transform_4, window_bounds = array<i64: 1, 64>}, {transform_indices = @transform_5, window_bounds = array<i64: 1, 16, 64>}]} {
    %c0 = arith.constant 0 : index
    %c0_0 = arith.constant 0 : index
    %c0_1 = arith.constant 0 : index
    %0 = vector.load %arg1[%c0, %c0_0, %c0_1] : memref<1x18x72xbf16, #tpu.memory_space<vmem>>, vector<1x18x72xbf16>
    %1 = vector.shape_cast %0 : vector<1x18x72xbf16> to vector<18x72xbf16>
    %2 = arith.extf %1 : vector<18x72xbf16> to vector<18x72xf32>
    %cst = arith.constant 0.000000e+00 : f32
    %3 = vector.broadcast %cst : f32 to vector<16x72xf32>
    %4 = vector.extract_strided_slice %2 {offsets = [0, 0], sizes = [16, 72], strides = [1, 1]} : vector<18x72xf32> to vector<16x72xf32>
    %5 = arith.truncf %4 : vector<16x72xf32> to vector<16x72xbf16>
    %c0_2 = arith.constant 0 : index
    %c0_3 = arith.constant 0 : index
    %c0_4 = arith.constant 0 : index
    %6 = vector.load %arg2[%c0_2, %c0_3, %c0_4] : memref<3x72x72xbf16, #tpu.memory_space<vmem>>, vector<1x72x72xbf16>
    %7 = vector.shape_cast %6 : vector<1x72x72xbf16> to vector<72x72xbf16>
    %cst_5 = arith.constant dense<0.000000e+00> : vector<16x72xf32>
    %8 = tpu.matmul %5, %7, %cst_5 {dimension_numbers = #tpu.dot_dimension_numbers<[1], [0], [0], [1], [0, 0, 1, 1], [], []>} : vector<16x72xbf16>, vector<72x72xbf16>, vector<16x72xf32> -> vector<16x72xf32>
    %9 = arith.addf %3, %8 : vector<16x72xf32>
    %10 = vector.extract_strided_slice %2 {offsets = [1, 0], sizes = [16, 72], strides = [1, 1]} : vector<18x72xf32> to vector<16x72xf32>
    %11 = arith.truncf %10 : vector<16x72xf32> to vector<16x72xbf16>
    %c1 = arith.constant 1 : index
    %c0_6 = arith.constant 0 : index
    %c0_7 = arith.constant 0 : index
    %12 = vector.load %arg2[%c1, %c0_6, %c0_7] : memref<3x72x72xbf16, #tpu.memory_space<vmem>>, vector<1x72x72xbf16>
    %13 = vector.shape_cast %12 : vector<1x72x72xbf16> to vector<72x72xbf16>
    %cst_8 = arith.constant dense<0.000000e+00> : vector<16x72xf32>
    %14 = tpu.matmul %11, %13, %cst_8 {dimension_numbers = #tpu.dot_dimension_numbers<[1], [0], [0], [1], [0, 0, 1, 1], [], []>} : vector<16x72xbf16>, vector<72x72xbf16>, vector<16x72xf32> -> vector<16x72xf32>
    %15 = arith.addf %9, %14 : vector<16x72xf32>
    %16 = vector.extract_strided_slice %2 {offsets = [2, 0], sizes = [16, 72], strides = [1, 1]} : vector<18x72xf32> to vector<16x72xf32>
    %17 = arith.truncf %16 : vector<16x72xf32> to vector<16x72xbf16>
    %c2 = arith.constant 2 : index
    %c0_9 = arith.constant 0 : index
    %c0_10 = arith.constant 0 : index
    %18 = vector.load %arg2[%c2, %c0_9, %c0_10] : memref<3x72x72xbf16, #tpu.memory_space<vmem>>, vector<1x72x72xbf16>
    %19 = vector.shape_cast %18 : vector<1x72x72xbf16> to vector<72x72xbf16>
    %cst_11 = arith.constant dense<0.000000e+00> : vector<16x72xf32>
    %20 = tpu.matmul %17, %19, %cst_11 {dimension_numbers = #tpu.dot_dimension_numbers<[1], [0], [0], [1], [0, 0, 1, 1], [], []>} : vector<16x72xbf16>, vector<72x72xbf16>, vector<16x72xf32> -> vector<16x72xf32>
    %21 = arith.addf %15, %20 : vector<16x72xf32>
    %c0_12 = arith.constant 0 : index
    %c0_13 = arith.constant 0 : index
    %22 = vector.load %arg3[%c0_12, %c0_13] : memref<1x72xf32, #tpu.memory_space<vmem>>, vector<1x72xf32>
    %23 = vector.broadcast %22 : vector<1x72xf32> to vector<16x72xf32>
    %24 = arith.addf %21, %23 : vector<16x72xf32>
    %cst_14 = arith.constant 0.000000e+00 : f32
    %25 = vector.broadcast %cst_14 : f32 to vector<16x72xf32>
    %26 = arith.maximumf %24, %25 : vector<16x72xf32>
    %cst_15 = arith.constant 0.000000e+00 : f32
    %27 = vector.broadcast %cst_15 : f32 to vector<1x72xf32>
    %c0_16 = arith.constant 0 : index
    %c0_17 = arith.constant 0 : index
    %28 = vector.load %arg7[%c0_16, %c0_17] : memref<18x72xf32, #tpu.memory_space<vmem>>, vector<1x72xf32>
    tpu.vector_store %arg7[%c0_16, %c0_17], %27 {strides = array<i32>} : memref<18x72xf32, #tpu.memory_space<vmem>>, vector<1x72xf32>,
    %cst_18 = arith.constant 0.000000e+00 : f32
    %29 = vector.broadcast %cst_18 : f32 to vector<1x72xf32>
    %c17 = arith.constant 17 : index
    %c0_19 = arith.constant 0 : index
    %30 = vector.load %arg7[%c17, %c0_19] : memref<18x72xf32, #tpu.memory_space<vmem>>, vector<1x72xf32>
    tpu.vector_store %arg7[%c17, %c0_19], %29 {strides = array<i32>} : memref<18x72xf32, #tpu.memory_space<vmem>>, vector<1x72xf32>,
    %c1_20 = arith.constant 1 : index
    %c0_21 = arith.constant 0 : index
    %31 = vector.load %arg7[%c1_20, %c0_21] : memref<18x72xf32, #tpu.memory_space<vmem>>, vector<16x72xf32>
    tpu.vector_store %arg7[%c1_20, %c0_21], %26 {strides = array<i32>} : memref<18x72xf32, #tpu.memory_space<vmem>>, vector<16x72xf32>,
    %cst_22 = arith.constant 0.000000e+00 : f32
    %32 = vector.broadcast %cst_22 : f32 to vector<16x64xf32>
    %c0_23 = arith.constant 0 : index
    %c0_24 = arith.constant 0 : index
    %33 = vector.load %arg7[%c0_23, %c0_24] : memref<18x72xf32, #tpu.memory_space<vmem>>, vector<16x72xf32>
    %34 = arith.truncf %33 : vector<16x72xf32> to vector<16x72xbf16>
    %c0_25 = arith.constant 0 : index
    %c0_26 = arith.constant 0 : index
    %c0_27 = arith.constant 0 : index
    %35 = vector.load %arg4[%c0_25, %c0_26, %c0_27] : memref<3x72x64xbf16, #tpu.memory_space<vmem>>, vector<1x72x64xbf16>
    %36 = vector.shape_cast %35 : vector<1x72x64xbf16> to vector<72x64xbf16>
    %cst_28 = arith.constant dense<0.000000e+00> : vector<16x64xf32>
    %37 = tpu.matmul %34, %36, %cst_28 {dimension_numbers = #tpu.dot_dimension_numbers<[1], [0], [0], [1], [0, 0, 1, 1], [], []>} : vector<16x72xbf16>, vector<72x64xbf16>, vector<16x64xf32> -> vector<16x64xf32>
    %38 = arith.addf %32, %37 : vector<16x64xf32>
    %c1_29 = arith.constant 1 : index
    %c0_30 = arith.constant 0 : index
    %39 = vector.load %arg7[%c1_29, %c0_30] : memref<18x72xf32, #tpu.memory_space<vmem>>, vector<16x72xf32>
    %40 = arith.truncf %39 : vector<16x72xf32> to vector<16x72xbf16>
    %c1_31 = arith.constant 1 : index
    %c0_32 = arith.constant 0 : index
    %c0_33 = arith.constant 0 : index
    %41 = vector.load %arg4[%c1_31, %c0_32, %c0_33] : memref<3x72x64xbf16, #tpu.memory_space<vmem>>, vector<1x72x64xbf16>
    %42 = vector.shape_cast %41 : vector<1x72x64xbf16> to vector<72x64xbf16>
    %cst_34 = arith.constant dense<0.000000e+00> : vector<16x64xf32>
    %43 = tpu.matmul %40, %42, %cst_34 {dimension_numbers = #tpu.dot_dimension_numbers<[1], [0], [0], [1], [0, 0, 1, 1], [], []>} : vector<16x72xbf16>, vector<72x64xbf16>, vector<16x64xf32> -> vector<16x64xf32>
    %44 = arith.addf %38, %43 : vector<16x64xf32>
    %c2_35 = arith.constant 2 : index
    %c0_36 = arith.constant 0 : index
    %45 = vector.load %arg7[%c2_35, %c0_36] : memref<18x72xf32, #tpu.memory_space<vmem>>, vector<16x72xf32>
    %46 = arith.truncf %45 : vector<16x72xf32> to vector<16x72xbf16>
    %c2_37 = arith.constant 2 : index
    %c0_38 = arith.constant 0 : index
    %c0_39 = arith.constant 0 : index
    %47 = vector.load %arg4[%c2_37, %c0_38, %c0_39] : memref<3x72x64xbf16, #tpu.memory_space<vmem>>, vector<1x72x64xbf16>
    %48 = vector.shape_cast %47 : vector<1x72x64xbf16> to vector<72x64xbf16>
    %cst_40 = arith.constant dense<0.000000e+00> : vector<16x64xf32>
    %49 = tpu.matmul %46, %48, %cst_40 {dimension_numbers = #tpu.dot_dimension_numbers<[1], [0], [0], [1], [0, 0, 1, 1], [], []>} : vector<16x72xbf16>, vector<72x64xbf16>, vector<16x64xf32> -> vector<16x64xf32>
    %50 = arith.addf %44, %49 : vector<16x64xf32>
    %51 = vector.extract_strided_slice %2 {offsets = [1, 4], sizes = [16, 64], strides = [1, 1]} : vector<18x72xf32> to vector<16x64xf32>
    %c0_41 = arith.constant 0 : index
    %c0_42 = arith.constant 0 : index
    %52 = vector.load %arg5[%c0_41, %c0_42] : memref<1x64xf32, #tpu.memory_space<vmem>>, vector<1x64xf32>
    %53 = vector.broadcast %52 : vector<1x64xf32> to vector<16x64xf32>
    %54 = arith.addf %50, %53 : vector<16x64xf32>
    %55 = arith.addf %54, %51 : vector<16x64xf32>
    %cst_43 = arith.constant 0.000000e+00 : f32
    %56 = vector.broadcast %cst_43 : f32 to vector<16x64xf32>
    %57 = arith.maximumf %55, %56 : vector<16x64xf32>
    %c0_44 = arith.constant 0 : index
    %c0_45 = arith.constant 0 : index
    %c0_46 = arith.constant 0 : index
    %58 = vector.load %arg6[%c0_44, %c0_45, %c0_46] : memref<1x16x64xf32, #tpu.memory_space<vmem>>, vector<1x16x64xf32>
    %59 = vector.shape_cast %58 : vector<1x16x64xf32> to vector<16x64xf32>
    %60 = vector.shape_cast %57 : vector<16x64xf32> to vector<1x16x64xf32>
    tpu.vector_store %arg6[%c0_44, %c0_45, %c0_46], %60 {strides = array<i32>} : memref<1x16x64xf32, #tpu.memory_space<vmem>>, vector<1x16x64xf32>,
    return
  }
  func.func @transform_0(%arg0: i32) -> (i32, i32, i32) {
    %c0_i32 = arith.constant 0 : i32
    %c0_i32_0 = arith.constant 0 : i32
    %c0_i32_1 = arith.constant 0 : i32
    return %arg0, %c0_i32, %c0_i32_0 : i32, i32, i32
  }
  func.func @transform_1(%arg0: i32) -> (i32, i32, i32) {
    %c0_i32 = arith.constant 0 : i32
    %c0_i32_0 = arith.constant 0 : i32
    %c0_i32_1 = arith.constant 0 : i32
    %c0_i32_2 = arith.constant 0 : i32
    return %c0_i32, %c0_i32_0, %c0_i32_1 : i32, i32, i32
  }
  func.func @transform_2(%arg0: i32) -> (i32, i32) {
    %c0_i32 = arith.constant 0 : i32
    %c0_i32_0 = arith.constant 0 : i32
    %c0_i32_1 = arith.constant 0 : i32
    return %c0_i32, %c0_i32_0 : i32, i32
  }
  func.func @transform_3(%arg0: i32) -> (i32, i32, i32) {
    %c0_i32 = arith.constant 0 : i32
    %c0_i32_0 = arith.constant 0 : i32
    %c0_i32_1 = arith.constant 0 : i32
    %c0_i32_2 = arith.constant 0 : i32
    return %c0_i32, %c0_i32_0, %c0_i32_1 : i32, i32, i32
  }
  func.func @transform_4(%arg0: i32) -> (i32, i32) {
    %c0_i32 = arith.constant 0 : i32
    %c0_i32_0 = arith.constant 0 : i32
    %c0_i32_1 = arith.constant 0 : i32
    return %c0_i32, %c0_i32_0 : i32, i32
  }
  func.func @transform_5(%arg0: i32) -> (i32, i32, i32) {
    %c0_i32 = arith.constant 0 : i32
    %c0_i32_0 = arith.constant 0 : i32
    %c0_i32_1 = arith.constant 0 : i32
    return %arg0, %c0_i32, %c0_i32_0 : i32, i32, i32
  }
}

</mosaic_0001>

<llo_original>
// kernel: tpu_custom_call.1
$region0: #{tpu_custom_call.1}
  #allocation0 [shape = 'u32[]', space=smem, size = 0x4, offset = 0x4, fixed_abs, tag = 'smem constant byte address 0x4 - core index']
  #allocation1 [shape = 'u32[144,128]{1,0:T(1,128)}', space=vmem, size = 0x12000, scoped, tag = 'internal scratch']
  #allocation2 [shape = 'f32[18,72]{1,0:T(8,128)}', space=vmem, size = 0x3000, scoped, tag = 'scratch operand']
  %s0 = inlined_call_operand.vmem [shape: bf16[2,18,72], index: 0, kind: input, shape index: {}]
  %s1 = inlined_call_operand.vmem [shape: bf16[3,72,72], index: 1, kind: input, shape index: {}]
  %s2 = inlined_call_operand.vmem [shape: f32[1,72], index: 2, kind: input, shape index: {}]
  %s3 = inlined_call_operand.vmem [shape: bf16[3,72,64], index: 3, kind: input, shape index: {}]
  %s4 = inlined_call_operand.vmem [shape: f32[1,64], index: 4, kind: input, shape index: {}]
  %s5 = inlined_call_operand.hbm [shape: f32[2,16,64], index: 5, kind: output, shape index: {}]
  %s6 = sld [smem:[#allocation0]]
  $region53: #{tpu_custom_call.1} parent=0
    _
  %s8 = ssub.s32 1, %s6
  %s9 = scalar_select 0, %s8, %s6
  $region1: #{tpu_custom_call.1} parent=0
    #allocation3 [shape = 'u8[16384]{0}', space=vmem, size = 0x4000, scoped, tag = 'output window, operand 0']
    #allocation4 [shape = 's32[2]{0}', space=sflag, size = 0x8, scoped, tag = 'scoped memory for tpu_custom_call.1']
    %10 = vsyncpa [#allocation4], 0
    %s11 = scalar_lea.sflag [#allocation4], 1
    %12 = vsyncpa %s11, 0
    loop: start=0, step=1, limit=4
    $region2: #{tpu_custom_call.1} parent=1 // loop_pre_header
      _
    $region3: #{tpu_custom_call.1} parent=1 // loop_header
      %s14 = sphi 0, %s18
      %p15 = scmp.ge.s32.totalorder %s14, 4
      %s24 = sphi 0, %s26
      %s27 = sphi 0, %s24
      %s28 = sphi 0, %s27
      %s44 = sphi 0, %s28
      %s48 = sphi 0, %s48
      %s50 = sphi 0, %s48
      %s51 = sphi 0, %s50
      %s65 = sphi 0, %s51
      %s69 = sphi 0, %s69
      %s71 = sphi 0, %s69
      %s72 = sphi 0, %s71
      %s86 = sphi 0, %s72
      %s90 = sphi 0, %s90
      %s92 = sphi 0, %s90
      %s93 = sphi 0, %s92
      %s107 = sphi 0, %s93
      %s111 = sphi 0, %s111
      %s113 = sphi 0, %s111
      %s114 = sphi 0, %s113
      %s128 = sphi 0, %s114
      %s134 = sphi 0, %s136
      %s137 = sphi 0, %s134
      %s138 = sphi 0, %s137
      %s154 = sphi 0, %s138
    $region4: #{tpu_custom_call.1} parent=1 // loop_header_branch
      %17 = sbr.rel (%p15) target = $region8
    $region5: #{tpu_custom_call.1} parent=1 // loop_body
      %s19 = ssub.s32 %s14, 1
      %s20 = ssub.s32 %s14, 2
      %s21 = sadd.s32 %s14, 1
      %s22 = ssub.s32 %s14, %s21
      %p23 = scmp.eq.s32.totalorder %s22, 0
      %s25 = sadd.s32 %s24, 1
      %s26 = scalar_select %p23, %s24, %s25
      %p29 = pneg %p23
      %p30 = scmp.eq.s32.totalorder %s14, 1
      %p31 = por %p29, %p30
      %p32 = scmp.ne.s32.totalorder %s24, %s27
      %p33 = scmp.eq.s32.totalorder %s14, 0
      %p34 = por %p32, %p33
      %p35 = scmp.ne.s32.totalorder %s24, %s27
      %p36 = scmp.eq.s32.totalorder %s19, 1
      %p37 = por %p35, %p36
      %p38 = scmp.ne.s32.totalorder %s27, %s28
      %p39 = scmp.eq.s32.totalorder %s19, 0
      %p40 = por %p38, %p39
      %p41 = scmp.ne.s32.totalorder %s27, %s28
      %p42 = scmp.eq.s32.totalorder %s20, 1
      %p43 = por %p41, %p42
      %p45 = scmp.ne.s32.totalorder %s28, %s44
      %p46 = scmp.eq.s32.totalorder %s20, 0
      %p47 = por %p45, %p46
      %s49 = sadd.s32 %s48, 1
      %p52 = scmp.eq.s32.totalorder %s14, 1
      %p53 = scmp.ne.s32.totalorder %s48, %s50
      %p54 = scmp.eq.s32.totalorder %s14, 0
      %p55 = por %p53, %p54
      %p56 = scmp.ne.s32.totalorder %s48, %s50
      %p57 = scmp.eq.s32.totalorder %s19, 1
      %p58 = por %p56, %p57
      %p59 = scmp.ne.s32.totalorder %s50, %s51
      %p60 = scmp.eq.s32.totalorder %s19, 0
      %p61 = por %p59, %p60
      %p62 = scmp.ne.s32.totalorder %s50, %s51
      %p63 = scmp.eq.s32.totalorder %s20, 1
      %p64 = por %p62, %p63
      %p66 = scmp.ne.s32.totalorder %s51, %s65
      %p67 = scmp.eq.s32.totalorder %s20, 0
      %p68 = por %p66, %p67
      %s70 = sadd.s32 %s69, 1
      %p73 = scmp.eq.s32.totalorder %s14, 1
      %p74 = scmp.ne.s32.totalorder %s69, %s71
      %p75 = scmp.eq.s32.totalorder %s14, 0
      %p76 = por %p74, %p75
      %p77 = scmp.ne.s32.totalorder %s69, %s71
      %p78 = scmp.eq.s32.totalorder %s19, 1
      %p79 = por %p77, %p78
      %p80 = scmp.ne.s32.totalorder %s71, %s72
      %p81 = scmp.eq.s32.totalorder %s19, 0
      %p82 = por %p80, %p81
      %p83 = scmp.ne.s32.totalorder %s71, %s72
      %p84 = scmp.eq.s32.totalorder %s20, 1
      %p85 = por %p83, %p84
      %p87 = scmp.ne.s32.totalorder %s72, %s86
      %p88 = scmp.eq.s32.totalorder %s20, 0
      %p89 = por %p87, %p88
      %s91 = sadd.s32 %s90, 1
      %p94 = scmp.eq.s32.totalorder %s14, 1
      %p95 = scmp.ne.s32.totalorder %s90, %s92
      %p96 = scmp.eq.s32.totalorder %s14, 0
      %p97 = por %p95, %p96
      %p98 = scmp.ne.s32.totalorder %s90, %s92
      %p99 = scmp.eq.s32.totalorder %s19, 1
      %p100 = por %p98, %p99
      %p101 = scmp.ne.s32.totalorder %s92, %s93
      %p102 = scmp.eq.s32.totalorder %s19, 0
      %p103 = por %p101, %p102
      %p104 = scmp.ne.s32.totalorder %s92, %s93
      %p105 = scmp.eq.s32.totalorder %s20, 1
      %p106 = por %p104, %p105
      %p108 = scmp.ne.s32.totalorder %s93, %s107
      %p109 = scmp.eq.s32.totalorder %s20, 0
      %p110 = por %p108, %p109
      %s112 = sadd.s32 %s111, 1
      %p115 = scmp.eq.s32.totalorder %s14, 1
      %p116 = scmp.ne.s32.totalorder %s111, %s113
      %p117 = scmp.eq.s32.totalorder %s14, 0
      %p118 = por %p116, %p117
      %p119 = scmp.ne.s32.totalorder %s111, %s113
      %p120 = scmp.eq.s32.totalorder %s19, 1
      %p121 = por %p119, %p120
      %p122 = scmp.ne.s32.totalorder %s113, %s114
      %p123 = scmp.eq.s32.totalorder %s19, 0
      %p124 = por %p122, %p123
      %p125 = scmp.ne.s32.totalorder %s113, %s114
      %p126 = scmp.eq.s32.totalorder %s20, 1
      %p127 = por %p125, %p126
      %p129 = scmp.ne.s32.totalorder %s114, %s128
      %p130 = scmp.eq.s32.totalorder %s20, 0
      %p131 = por %p129, %p130
      %s132 = ssub.s32 %s14, %s21
      %p133 = scmp.eq.s32.totalorder %s132, 0
      %s135 = sadd.s32 %s134, 1
      %s136 = scalar_select %p133, %s134, %s135
      %p139 = pneg %p133
      %p140 = scmp.eq.s32.totalorder %s14, 1
      %p141 = por %p139, %p140
      %p142 = scmp.ne.s32.totalorder %s134, %s137
      %p143 = scmp.eq.s32.totalorder %s14, 0
      %p144 = por %p142, %p143
      %p145 = scmp.ne.s32.totalorder %s134, %s137
      %p146 = scmp.eq.s32.totalorder %s19, 1
      %p147 = por %p145, %p146
      %p148 = scmp.ne.s32.totalorder %s137, %s138
      %p149 = scmp.eq.s32.totalorder %s19, 0
      %p150 = por %p148, %p149
      %p151 = scmp.ne.s32.totalorder %s137, %s138
      %p152 = scmp.eq.s32.totalorder %s20, 1
      %p153 = por %p151, %p152
      %p155 = scmp.ne.s32.totalorder %s138, %s154
      %p156 = scmp.eq.s32.totalorder %s20, 0
      %p157 = por %p155, %p156
      %p158 = scmp.le.s32.totalorder 1, %s14
      %p159 = scmp.lt.s32.totalorder %s14, 3
      %p160 = pnand %p158, %p159
      %p161 = pneg %p160
      // Predicated region
      $region9: #{tpu_custom_call.1} parent=5 // pred_check
        _
      $region10: #{tpu_custom_call.1} parent=5 // pred_check_branch
        %163 = sbr.rel (%p160) target = $region12
      $region11: #{tpu_custom_call.1} parent=5 // pred_region
        %s164 = ssub.s32 %s14, 1
        // Predicated region
        $region13: #{tpu_custom_call.1} parent=11 // pred_check
          %p165 = pneg %p61
        $region14: #{tpu_custom_call.1} parent=11 // pred_check_branch
          %167 = sbr.rel (%p165) target = $region16
        $region15: #{tpu_custom_call.1} parent=11 // pred_region
          _
        $region16: #{tpu_custom_call.1} parent=11 // pred_fallthru
          _
        // Predicated region
        $region17: #{tpu_custom_call.1} parent=11 // pred_check
          %p168 = pneg %p82
        $region18: #{tpu_custom_call.1} parent=11 // pred_check_branch
          %170 = sbr.rel (%p168) target = $region20
        $region19: #{tpu_custom_call.1} parent=11 // pred_region
          _
        $region20: #{tpu_custom_call.1} parent=11 // pred_fallthru
          _
        // Predicated region
        $region21: #{tpu_custom_call.1} parent=11 // pred_check
          %p171 = pneg %p103
        $region22: #{tpu_custom_call.1} parent=11 // pred_check_branch
          %173 = sbr.rel (%p171) target = $region24
        $region23: #{tpu_custom_call.1} parent=11 // pred_region
          _
        $region24: #{tpu_custom_call.1} parent=11 // pred_fallthru
          _
        // Predicated region
        $region25: #{tpu_custom_call.1} parent=11 // pred_check
          %p174 = pneg %p124
        $region26: #{tpu_custom_call.1} parent=11 // pred_check_branch
          %176 = sbr.rel (%p174) target = $region28
        $region27: #{tpu_custom_call.1} parent=11 // pred_region
          _
        $region28: #{tpu_custom_call.1} parent=11 // pred_fallthru
          _
      $region12: #{tpu_custom_call.1} parent=5 // pred_fallthru
        _
      %p177 = scmp.lt.s32.totalorder %s14, 2
      // Predicated region
      $region29: #{tpu_custom_call.1} parent=5 // pred_check
        %p178 = pneg %p177
      $region30: #{tpu_custom_call.1} parent=5 // pred_check_branch
        %180 = sbr.rel (%p178) target = $region32
      $region31: #{tpu_custom_call.1} parent=5 // pred_region
        // Predicated region
        $region33: #{tpu_custom_call.1} parent=31 // pred_check
          %p181 = pneg %p34
        $region34: #{tpu_custom_call.1} parent=31 // pred_check_branch
          %183 = sbr.rel (%p181) target = $region36
        $region35: #{tpu_custom_call.1} parent=31 // pred_region
          %p184 = scmp.lt.s32.totalorder %s14, 1
          %s185 = scalar_select %p184, %s14, 1
          %s186 = smul.addr %s185, 3
          %s187 = smul.addr %s186, 4
          %s188 = scalar_lea.vmem %s0, %s187
        $region36: #{tpu_custom_call.1} parent=31 // pred_fallthru
          _
      $region32: #{tpu_custom_call.1} parent=5 // pred_fallthru
        _
      %p189 = scmp.le.s32.totalorder 1, %s14
      %p190 = scmp.lt.s32.totalorder %s14, 3
      %p191 = pnand %p189, %p190
      %p192 = pneg %p191
      // Predicated region
      $region37: #{tpu_custom_call.1} parent=5 // pred_check
        _
      $region38: #{tpu_custom_call.1} parent=5 // pred_check_branch
        %194 = sbr.rel (%p191) target = $region40
      $region39: #{tpu_custom_call.1} parent=5 // pred_region
        %s195 = ssub.s32 %s14, 1
        %p196 = scmp.lt.s32.totalorder %s19, 1
        %s197 = scalar_select %p196, %s19, 1
        %s198 = smul.addr %s197, 3
        %s199 = smul.addr %s198, 4
        %s200 = scalar_lea.vmem %s0, %s199
        %p201 = pneg %p40
        %p202 = pneg %p37
        %p203 = pneg %p61
        %p204 = pneg %p58
        %p205 = pneg %p82
        %p206 = pneg %p79
        %p207 = pneg %p103
        %p208 = pneg %p100
        %p209 = pneg %p124
        %p210 = pneg %p121
        %p211 = pneg %p150
        %p212 = pneg %p147
        %s213 = sand.u32 %s137, 1
        %s214 = scalar_lea.sflag [#allocation4], %s213
        %s215 = sand.u32 %s137, 1
        %s216 = smul.addr %s215, 16
        %s217 = scalar_lea.vmem [#allocation3], %s216
        %p218 = scmp.lt.s32.totalorder %s19, 1
        %s219 = scalar_select %p218, %s19, 1
        %s220 = smul.addr %s219, 3
        %s221 = smul.addr %s220, 4
        %s222 = scalar_lea.vmem %s0, %s221
        %v224 = vld [vmem:[%s222] sm:$0xf]
        %v225 = vld [vmem:[%s222 + $0x4] sm:$0xf]
        %v226 = vld [vmem:[%s222 + $0x8] sm:$0x1]
        %v227 = vunpack.c.l.bf16 %v224
        %v228 = vunpack.c.l.bf16 %v225
        %v229 = vunpack.c.l.bf16 %v226
        %v230 = vpack.c.bf16 %v228, %v227
        %v231 = vld [vmem:[%s1] sm:$0xf]
        %v232 = vld [vmem:[%s1 + $0x4] sm:$0xf]
        %v233 = vld [vmem:[%s1 + $0x8] sm:$0xf]
        %v234 = vld [vmem:[%s1 + $0xc] sm:$0xf]
        %v235 = vld [vmem:[%s1 + $0x10] sm:$0xf]
        %v236 = vld [vmem:[%s1 + $0x14] sm:$0xf]
        %v237 = vld [vmem:[%s1 + $0x18] sm:$0xf]
        %v238 = vld [vmem:[%s1 + $0x1c] sm:$0xf]
        %v239 = vld [vmem:[%s1 + $0x20] sm:$0xf]
        %v240 = vpack.c.bf16 %v229, %v229
        %s241 = scalar_lea.vmem %s1, 36
        %v242 = vld [vmem:[%s241] sm:$0xf]
        %v243 = vld [vmem:[%s241 + $0x4] sm:$0xf]
        %v244 = vld [vmem:[%s241 + $0x8] sm:$0xf]
        %v245 = vld [vmem:[%s241 + $0xc] sm:$0xf]
        %v246 = vld [vmem:[%s241 + $0x10] sm:$0xf]
        %v247 = vld [vmem:[%s241 + $0x14] sm:$0xf]
        %v248 = vld [vmem:[%s241 + $0x18] sm:$0xf]
        %v249 = vld [vmem:[%s241 + $0x1c] sm:$0xf]
        %v250 = vld [vmem:[%s241 + $0x20] sm:$0xf]
        %vm251 = vsmask.f32 7424
        %v253 = vshrl.u32 %v230, 16
        %v255 = vshll.u32 %v230, 16
        %v257 = vrot.slane %v255, 1
        %v258 = vor.u32 %v253, %v257
        %v260 = vshll.u32 %v240, 16
        %v262 = vrot.slane %v260, 1
        %v263 = vsel %vm251, %v258, %v262
        %v273 = vunpack.c.l.b16 %v242
        %v274 = vunpack.c.l.b16 %v243
        %v275 = vunpack.c.l.b16 %v244
        %v276 = vunpack.c.l.b16 %v245
        %v277 = vunpack.c.l.b16 %v246
        %v278 = vunpack.c.l.b16 %v247
        %v279 = vunpack.c.l.b16 %v248
        %v280 = vunpack.c.l.b16 %v249
        %v281 = vunpack.c.l.b16 %v250
        %v282 = vpack.c.b16 %v274, %v273
        %v283 = vpack.c.b16 %v276, %v275
        %v284 = vpack.c.b16 %v278, %v277
        %v285 = vpack.c.b16 %v280, %v279
        %v286 = vpack.c.b16 %v281, %v281
        %vm291 = vcmask 588800
        %v293 = vsel %vm291, %v263, 0
        %vm295 = vcmask 1043456
        %v297 = vsel %vm295, %v286, 0
        %299 = vmatprep.subr.bf16.mxu0 0
        %300 = vmatpush1.bf16.msra.mxu0 %v282
        %301 = vmatprep.subr.bf16.mxu0 0
        %302 = vmatpush1.bf16.msra.mxu0 %v283
        %303 = vmatprep.subr.bf16.mxu0 0
        %304 = vmatpush1.bf16.msra.mxu0 %v284
        %305 = vmatprep.subr.bf16.mxu0 0
        %306 = vmatpush1.bf16.msra.mxu0 %v285
        %307 = vmatprep.subr.bf16.mxu0 0
        %308 = vmatpush1.bf16.msra.mxu0 %v297
        %309 = vmatprep.subr.bf16.mxu0 0
        %310 = vmatpush1.bf16.msra.mxu0 0
        %311 = vmatprep.subr.bf16.mxu0 0
        %312 = vmatpush1.bf16.msra.mxu0 0
        %313 = vmatprep.subr.bf16.mxu0 0
        %314 = vmatpush1.bf16.msra.mxu0 0
        %315 = vmatprep.subr.bf16.mxu0 0
        %316 = vmatpush1.bf16.msra.mxu0 0
        %317 = vmatprep.subr.bf16.mxu0 0
        %318 = vmatpush1.bf16.msra.mxu0 0
        %319 = vmatprep.subr.bf16.mxu0 0
        %320 = vmatpush1.bf16.msra.mxu0 0
        %321 = vmatprep.subr.bf16.mxu0 0
        %322 = vmatpush1.bf16.msra.mxu0 0
        %323 = vmatprep.subr.bf16.mxu0 0
        %324 = vmatpush1.bf16.msra.mxu0 0
        %325 = vmatprep.subr.bf16.mxu0 0
        %326 = vmatpush1.bf16.msra.mxu0 0
        %327 = vmatprep.subr.bf16.mxu0 0
        %328 = vmatpush1.bf16.msra.mxu0 0
        %329 = vmatprep.subr.bf16.mxu0 0
        %330 = vmatpush1.bf16.msra.mxu0 0
        %331 = vmatprep.mubr.bf16.mxu0 0
        %332 = vmatmul.mubr.bf16.gmra.mrb[0].mxu0 %v293
        %v333 = vpop.f32.mrb[0].mxu0
        %v334 = vadd.f32 0.0, %v333
        %v335 = vpop.f32.mrb[0].mxu0
        %v336 = vpop.f32.mrb[0].mxu0
        %v337 = vadd.f32 0.0, %v336
        %v338 = vpop.f32.mrb[0].mxu0
        %339 = vdwg.mxu0
        %v349 = vunpack.c.l.b16 %v231
        %v350 = vunpack.c.l.b16 %v232
        %v351 = vunpack.c.l.b16 %v233
        %v352 = vunpack.c.l.b16 %v234
        %v353 = vunpack.c.l.b16 %v235
        %v354 = vunpack.c.l.b16 %v236
        %v355 = vunpack.c.l.b16 %v237
        %v356 = vunpack.c.l.b16 %v238
        %v357 = vunpack.c.l.b16 %v239
        %v358 = vpack.c.b16 %v350, %v349
        %v359 = vpack.c.b16 %v352, %v351
        %v360 = vpack.c.b16 %v354, %v353
        %v361 = vpack.c.b16 %v356, %v355
        %v362 = vpack.c.b16 %v357, %v357
        %v367 = vsel %vm291, %v230, 0
        %v370 = vsel %vm295, %v362, 0
        %372 = vmatprep.subr.bf16.mxu0 0
        %373 = vmatpush1.bf16.msra.mxu0 %v358
        %374 = vmatprep.subr.bf16.mxu0 0
        %375 = vmatpush1.bf16.msra.mxu0 %v359
        %376 = vmatprep.subr.bf16.mxu0 0
        %377 = vmatpush1.bf16.msra.mxu0 %v360
        %378 = vmatprep.subr.bf16.mxu0 0
        %379 = vmatpush1.bf16.msra.mxu0 %v361
        %380 = vmatprep.subr.bf16.mxu0 0
        %381 = vmatpush1.bf16.msra.mxu0 %v370
        %382 = vmatprep.subr.bf16.mxu0 0
        %383 = vmatpush1.bf16.msra.mxu0 0
        %384 = vmatprep.subr.bf16.mxu0 0
        %385 = vmatpush1.bf16.msra.mxu0 0
        %386 = vmatprep.subr.bf16.mxu0 0
        %387 = vmatpush1.bf16.msra.mxu0 0
        %388 = vmatprep.subr.bf16.mxu0 0
        %389 = vmatpush1.bf16.msra.mxu0 0
        %390 = vmatprep.subr.bf16.mxu0 0
        %391 = vmatpush1.bf16.msra.mxu0 0
        %392 = vmatprep.subr.bf16.mxu0 0
        %393 = vmatpush1.bf16.msra.mxu0 0
        %394 = vmatprep.subr.bf16.mxu0 0
        %395 = vmatpush1.bf16.msra.mxu0 0
        %396 = vmatprep.subr.bf16.mxu0 0
        %397 = vmatpush1.bf16.msra.mxu0 0
        %398 = vmatprep.subr.bf16.mxu0 0
        %399 = vmatpush1.bf16.msra.mxu0 0
        %400 = vmatprep.subr.bf16.mxu0 0
        %401 = vmatpush1.bf16.msra.mxu0 0
        %402 = vmatprep.subr.bf16.mxu0 0
        %403 = vmatpush1.bf16.msra.mxu0 0
        %404 = vmatprep.mubr.bf16.mxu0 0
        %405 = vmatmul.mubr.bf16.gmra.mrb[0].mxu0 %v367
        %v406 = vpop.f32.mrb[0].mxu0
        %v407 = vadd.f32 %v334, %v406
        %v408 = vpop.f32.mrb[0].mxu0
        %v409 = vpop.f32.mrb[0].mxu0
        %v410 = vadd.f32 %v337, %v409
        %v411 = vpop.f32.mrb[0].mxu0
        %412 = vdwg.mxu0
        %s413 = scalar_lea.vmem %s1, 72
        %v414 = vld [vmem:[%s413] sm:$0xf]
        %v415 = vld [vmem:[%s413 + $0x4] sm:$0xf]
        %v416 = vld [vmem:[%s413 + $0x8] sm:$0xf]
        %v417 = vld [vmem:[%s413 + $0xc] sm:$0xf]
        %v418 = vld [vmem:[%s413 + $0x10] sm:$0xf]
        %v419 = vld [vmem:[%s413 + $0x14] sm:$0xf]
        %v420 = vld [vmem:[%s413 + $0x18] sm:$0xf]
        %v421 = vld [vmem:[%s413 + $0x1c] sm:$0xf]
        %v422 = vld [vmem:[%s413 + $0x20] sm:$0xf]
        %vm425 = vcmask 1046528
        %v426 = vrot.slane %v230, 1
        %v427 = vrot.slane %v240, 1
        %v428 = vsel %vm425, %v426, %v427
        %v438 = vunpack.c.l.b16 %v414
        %v439 = vunpack.c.l.b16 %v415
        %v440 = vunpack.c.l.b16 %v416
        %v441 = vunpack.c.l.b16 %v417
        %v442 = vunpack.c.l.b16 %v418
        %v443 = vunpack.c.l.b16 %v419
        %v444 = vunpack.c.l.b16 %v420
        %v445 = vunpack.c.l.b16 %v421
        %v446 = vunpack.c.l.b16 %v422
        %v447 = vpack.c.b16 %v439, %v438
        %v448 = vpack.c.b16 %v441, %v440
        %v449 = vpack.c.b16 %v443, %v442
        %v450 = vpack.c.b16 %v445, %v444
        %v451 = vpack.c.b16 %v446, %v446
        %v457 = vsel %vm291, %v428, 0
        %v460 = vsel %vm295, %v451, 0
        %462 = vmatprep.subr.bf16.mxu0 0
        %463 = vmatpush1.bf16.msra.mxu0 %v447
        %464 = vmatprep.subr.bf16.mxu0 0
        %465 = vmatpush1.bf16.msra.mxu0 %v448
        %466 = vmatprep.subr.bf16.mxu0 0
        %467 = vmatpush1.bf16.msra.mxu0 %v449
        %468 = vmatprep.subr.bf16.mxu0 0
        %469 = vmatpush1.bf16.msra.mxu0 %v450
        %470 = vmatprep.subr.bf16.mxu0 0
        %471 = vmatpush1.bf16.msra.mxu0 %v460
        %472 = vmatprep.subr.bf16.mxu0 0
        %473 = vmatpush1.bf16.msra.mxu0 0
        %474 = vmatprep.subr.bf16.mxu0 0
        %475 = vmatpush1.bf16.msra.mxu0 0
        %476 = vmatprep.subr.bf16.mxu0 0
        %477 = vmatpush1.bf16.msra.mxu0 0
        %478 = vmatprep.subr.bf16.mxu0 0
        %479 = vmatpush1.bf16.msra.mxu0 0
        %480 = vmatprep.subr.bf16.mxu0 0
        %481 = vmatpush1.bf16.msra.mxu0 0
        %482 = vmatprep.subr.bf16.mxu0 0
        %483 = vmatpush1.bf16.msra.mxu0 0
        %484 = vmatprep.subr.bf16.mxu0 0
        %485 = vmatpush1.bf16.msra.mxu0 0
        %486 = vmatprep.subr.bf16.mxu0 0
        %487 = vmatpush1.bf16.msra.mxu0 0
        %488 = vmatprep.subr.bf16.mxu0 0
        %489 = vmatpush1.bf16.msra.mxu0 0
        %490 = vmatprep.subr.bf16.mxu0 0
        %491 = vmatpush1.bf16.msra.mxu0 0
        %492 = vmatprep.subr.bf16.mxu0 0
        %493 = vmatpush1.bf16.msra.mxu0 0
        %494 = vmatprep.mubr.bf16.mxu0 0
        %495 = vmatmul.mubr.bf16.gmra.mrb[0].mxu0 %v457
        %v496 = vpop.f32.mrb[0].mxu0
        %v497 = vadd.f32 0.0, %v496
        %v498 = vpop.f32.mrb[0].mxu0
        %v499 = vpop.f32.mrb[0].mxu0
        %v500 = vadd.f32 0.0, %v499
        %v501 = vpop.f32.mrb[0].mxu0
        %502 = vdwg.mxu0
        %v503 = vadd.f32 %v407, %v497
        %v504 = vadd.f32 %v410, %v500
        %v505 = vld [vmem:[%s2] sm:$0x1]
        %v507 = vlaneseq
        %v508 = vshrl.u32 %v507, 7
        %v509 = vsub.s32 0, %v508
        %v510 = vrot.slane %v505, %v509
        %v512 = vadd.f32 %v503, %v510
        %v513 = vadd.f32 %v504, %v510
        %v514 = vmax.f32 %v512, 0.0
        %v515 = vmax.f32 %v513, 0.0
        %vm516 = vcmask 581632
        %517 = vst.msk [vmem:[#allocation2] sm:$0x1] %vm516, 0.0
        %518 = vst.msk [vmem:[#allocation2 + $0x11] sm:$0x1] %vm516, 0.0
        %519 = vst.msk [vmem:[#allocation2 + $0x1] sm:$0xff] %vm291, %v514
        %520 = vst.msk [vmem:[#allocation2 + $0x9] sm:$0xff] %vm291, %v515
        %v521 = vld [vmem:[#allocation2] sm:$0xff]
        %v522 = vld [vmem:[#allocation2 + $0x8] sm:$0xff]
        %v523 = vpack.c.bf16 %v522, %v521
        %v524 = vld [vmem:[%s3] sm:$0xf]
        %v525 = vld [vmem:[%s3 + $0x4] sm:$0xf]
        %v526 = vld [vmem:[%s3 + $0x8] sm:$0xf]
        %v527 = vld [vmem:[%s3 + $0xc] sm:$0xf]
        %v528 = vld [vmem:[%s3 + $0x10] sm:$0xf]
        %v529 = vld [vmem:[%s3 + $0x14] sm:$0xf]
        %v530 = vld [vmem:[%s3 + $0x18] sm:$0xf]
        %v531 = vld [vmem:[%s3 + $0x1c] sm:$0xf]
        %v532 = vld [vmem:[%s3 + $0x20] sm:$0xf]
        %v533 = vld [vmem:[#allocation2 + $0x1] sm:$0xff]
        %v534 = vld [vmem:[#allocation2 + $0x9] sm:$0xff]
        %v535 = vpack.c.bf16 %v534, %v533
        %s536 = scalar_lea.vmem %s3, 36
        %v537 = vld [vmem:[%s536] sm:$0xf]
        %v538 = vld [vmem:[%s536 + $0x4] sm:$0xf]
        %v539 = vld [vmem:[%s536 + $0x8] sm:$0xf]
        %v540 = vld [vmem:[%s536 + $0xc] sm:$0xf]
        %v541 = vld [vmem:[%s536 + $0x10] sm:$0xf]
        %v542 = vld [vmem:[%s536 + $0x14] sm:$0xf]
        %v543 = vld [vmem:[%s536 + $0x18] sm:$0xf]
        %v544 = vld [vmem:[%s536 + $0x1c] sm:$0xf]
        %v545 = vld [vmem:[%s536 + $0x20] sm:$0xf]
        %v555 = vunpack.c.l.b16 %v537
        %v556 = vunpack.c.l.b16 %v538
        %v557 = vunpack.c.l.b16 %v539
        %v558 = vunpack.c.l.b16 %v540
        %v559 = vunpack.c.l.b16 %v541
        %v560 = vunpack.c.l.b16 %v542
        %v561 = vunpack.c.l.b16 %v543
        %v562 = vunpack.c.l.b16 %v544
        %v563 = vunpack.c.l.b16 %v545
        %v564 = vpack.c.b16 %v556, %v555
        %v565 = vpack.c.b16 %v558, %v557
        %v566 = vpack.c.b16 %v560, %v559
        %v567 = vpack.c.b16 %v562, %v561
        %v568 = vpack.c.b16 %v563, %v563
        %v574 = vsel %vm291, %v535, 0
        %v577 = vsel %vm295, %v568, 0
        %579 = vmatprep.subr.bf16.mxu0 0
        %580 = vmatpush1.bf16.msra.mxu0 %v564
        %581 = vmatprep.subr.bf16.mxu0 0
        %582 = vmatpush1.bf16.msra.mxu0 %v565
        %583 = vmatprep.subr.bf16.mxu0 0
        %584 = vmatpush1.bf16.msra.mxu0 %v566
        %585 = vmatprep.subr.bf16.mxu0 0
        %586 = vmatpush1.bf16.msra.mxu0 %v567
        %587 = vmatprep.subr.bf16.mxu0 0
        %588 = vmatpush1.bf16.msra.mxu0 %v577
        %589 = vmatprep.subr.bf16.mxu0 0
        %590 = vmatpush1.bf16.msra.mxu0 0
        %591 = vmatprep.subr.bf16.mxu0 0
        %592 = vmatpush1.bf16.msra.mxu0 0
        %593 = vmatprep.subr.bf16.mxu0 0
        %594 = vmatpush1.bf16.msra.mxu0 0
        %595 = vmatprep.subr.bf16.mxu0 0
        %596 = vmatpush1.bf16.msra.mxu0 0
        %597 = vmatprep.subr.bf16.mxu0 0
        %598 = vmatpush1.bf16.msra.mxu0 0
        %599 = vmatprep.subr.bf16.mxu0 0
        %600 = vmatpush1.bf16.msra.mxu0 0
        %601 = vmatprep.subr.bf16.mxu0 0
        %602 = vmatpush1.bf16.msra.mxu0 0
        %603 = vmatprep.subr.bf16.mxu0 0
        %604 = vmatpush1.bf16.msra.mxu0 0
        %605 = vmatprep.subr.bf16.mxu0 0
        %606 = vmatpush1.bf16.msra.mxu0 0
        %607 = vmatprep.subr.bf16.mxu0 0
        %608 = vmatpush1.bf16.msra.mxu0 0
        %609 = vmatprep.subr.bf16.mxu0 0
        %610 = vmatpush1.bf16.msra.mxu0 0
        %611 = vmatprep.mubr.bf16.mxu0 0
        %612 = vmatmul.mubr.bf16.gmra.mrb[0].mxu0 %v574
        %v613 = vpop.f32.mrb[0].mxu0
        %v614 = vadd.f32 0.0, %v613
        %v615 = vpop.f32.mrb[0].mxu0
        %v616 = vpop.f32.mrb[0].mxu0
        %v617 = vadd.f32 0.0, %v616
        %v618 = vpop.f32.mrb[0].mxu0
        %619 = vdwg.mxu0
        %v629 = vunpack.c.l.b16 %v524
        %v630 = vunpack.c.l.b16 %v525
        %v631 = vunpack.c.l.b16 %v526
        %v632 = vunpack.c.l.b16 %v527
        %v633 = vunpack.c.l.b16 %v528
        %v634 = vunpack.c.l.b16 %v529
        %v635 = vunpack.c.l.b16 %v530
        %v636 = vunpack.c.l.b16 %v531
        %v637 = vunpack.c.l.b16 %v532
        %v638 = vpack.c.b16 %v630, %v629
        %v639 = vpack.c.b16 %v632, %v631
        %v640 = vpack.c.b16 %v634, %v633
        %v641 = vpack.c.b16 %v636, %v635
        %v642 = vpack.c.b16 %v637, %v637
        %v648 = vsel %vm291, %v523, 0
        %v651 = vsel %vm295, %v642, 0
        %653 = vmatprep.subr.bf16.mxu0 0
        %654 = vmatpush1.bf16.msra.mxu0 %v638
        %655 = vmatprep.subr.bf16.mxu0 0
        %656 = vmatpush1.bf16.msra.mxu0 %v639
        %657 = vmatprep.subr.bf16.mxu0 0
        %658 = vmatpush1.bf16.msra.mxu0 %v640
        %659 = vmatprep.subr.bf16.mxu0 0
        %660 = vmatpush1.bf16.msra.mxu0 %v641
        %661 = vmatprep.subr.bf16.mxu0 0
        %662 = vmatpush1.bf16.msra.mxu0 %v651
        %663 = vmatprep.subr.bf16.mxu0 0
        %664 = vmatpush1.bf16.msra.mxu0 0
        %665 = vmatprep.subr.bf16.mxu0 0
        %666 = vmatpush1.bf16.msra.mxu0 0
        %667 = vmatprep.subr.bf16.mxu0 0
        %668 = vmatpush1.bf16.msra.mxu0 0
        %669 = vmatprep.subr.bf16.mxu0 0
        %670 = vmatpush1.bf16.msra.mxu0 0
        %671 = vmatprep.subr.bf16.mxu0 0
        %672 = vmatpush1.bf16.msra.mxu0 0
        %673 = vmatprep.subr.bf16.mxu0 0
        %674 = vmatpush1.bf16.msra.mxu0 0
        %675 = vmatprep.subr.bf16.mxu0 0
        %676 = vmatpush1.bf16.msra.mxu0 0
        %677 = vmatprep.subr.bf16.mxu0 0
        %678 = vmatpush1.bf16.msra.mxu0 0
        %679 = vmatprep.subr.bf16.mxu0 0
        %680 = vmatpush1.bf16.msra.mxu0 0
        %681 = vmatprep.subr.bf16.mxu0 0
        %682 = vmatpush1.bf16.msra.mxu0 0
        %683 = vmatprep.subr.bf16.mxu0 0
        %684 = vmatpush1.bf16.msra.mxu0 0
        %685 = vmatprep.mubr.bf16.mxu0 0
        %686 = vmatmul.mubr.bf16.gmra.mrb[0].mxu0 %v648
        %v687 = vpop.f32.mrb[0].mxu0
        %v688 = vadd.f32 %v614, %v687
        %v689 = vpop.f32.mrb[0].mxu0
        %v690 = vpop.f32.mrb[0].mxu0
        %v691 = vadd.f32 %v617, %v690
        %v692 = vpop.f32.mrb[0].mxu0
        %693 = vdwg.mxu0
        %v694 = vld [vmem:[#allocation2 + $0x2] sm:$0xff]
        %v695 = vld [vmem:[#allocation2 + $0xa] sm:$0xff]
        %v696 = vpack.c.bf16 %v695, %v694
        %s697 = scalar_lea.vmem %s3, 72
        %v698 = vld [vmem:[%s697] sm:$0xf]
        %v699 = vld [vmem:[%s697 + $0x4] sm:$0xf]
        %v700 = vld [vmem:[%s697 + $0x8] sm:$0xf]
        %v701 = vld [vmem:[%s697 + $0xc] sm:$0xf]
        %v702 = vld [vmem:[%s697 + $0x10] sm:$0xf]
        %v703 = vld [vmem:[%s697 + $0x14] sm:$0xf]
        %v704 = vld [vmem:[%s697 + $0x18] sm:$0xf]
        %v705 = vld [vmem:[%s697 + $0x1c] sm:$0xf]
        %v706 = vld [vmem:[%s697 + $0x20] sm:$0xf]
        %v716 = vunpack.c.l.b16 %v698
        %v717 = vunpack.c.l.b16 %v699
        %v718 = vunpack.c.l.b16 %v700
        %v719 = vunpack.c.l.b16 %v701
        %v720 = vunpack.c.l.b16 %v702
        %v721 = vunpack.c.l.b16 %v703
        %v722 = vunpack.c.l.b16 %v704
        %v723 = vunpack.c.l.b16 %v705
        %v724 = vunpack.c.l.b16 %v706
        %v725 = vpack.c.b16 %v717, %v716
        %v726 = vpack.c.b16 %v719, %v718
        %v727 = vpack.c.b16 %v721, %v720
        %v728 = vpack.c.b16 %v723, %v722
        %v729 = vpack.c.b16 %v724, %v724
        %v735 = vsel %vm291, %v696, 0
        %v738 = vsel %vm295, %v729, 0
        %740 = vmatprep.subr.bf16.mxu0 0
        %741 = vmatpush1.bf16.msra.mxu0 %v725
        %742 = vmatprep.subr.bf16.mxu0 0
        %743 = vmatpush1.bf16.msra.mxu0 %v726
        %744 = vmatprep.subr.bf16.mxu0 0
        %745 = vmatpush1.bf16.msra.mxu0 %v727
        %746 = vmatprep.subr.bf16.mxu0 0
        %747 = vmatpush1.bf16.msra.mxu0 %v728
        %748 = vmatprep.subr.bf16.mxu0 0
        %749 = vmatpush1.bf16.msra.mxu0 %v738
        %750 = vmatprep.subr.bf16.mxu0 0
        %751 = vmatpush1.bf16.msra.mxu0 0
        %752 = vmatprep.subr.bf16.mxu0 0
        %753 = vmatpush1.bf16.msra.mxu0 0
        %754 = vmatprep.subr.bf16.mxu0 0
        %755 = vmatpush1.bf16.msra.mxu0 0
        %756 = vmatprep.subr.bf16.mxu0 0
        %757 = vmatpush1.bf16.msra.mxu0 0
        %758 = vmatprep.subr.bf16.mxu0 0
        %759 = vmatpush1.bf16.msra.mxu0 0
        %760 = vmatprep.subr.bf16.mxu0 0
        %761 = vmatpush1.bf16.msra.mxu0 0
        %762 = vmatprep.subr.bf16.mxu0 0
        %763 = vmatpush1.bf16.msra.mxu0 0
        %764 = vmatprep.subr.bf16.mxu0 0
        %765 = vmatpush1.bf16.msra.mxu0 0
        %766 = vmatprep.subr.bf16.mxu0 0
        %767 = vmatpush1.bf16.msra.mxu0 0
        %768 = vmatprep.subr.bf16.mxu0 0
        %769 = vmatpush1.bf16.msra.mxu0 0
        %770 = vmatprep.subr.bf16.mxu0 0
        %771 = vmatpush1.bf16.msra.mxu0 0
        %772 = vmatprep.mubr.bf16.mxu0 0
        %773 = vmatmul.mubr.bf16.gmra.mrb[0].mxu0 %v735
        %v774 = vpop.f32.mrb[0].mxu0
        %v775 = vadd.f32 0.0, %v774
        %v776 = vpop.f32.mrb[0].mxu0
        %v777 = vpop.f32.mrb[0].mxu0
        %v778 = vadd.f32 0.0, %v777
        %v779 = vpop.f32.mrb[0].mxu0
        %780 = vdwg.mxu0
        %v781 = vadd.f32 %v688, %v775
        %v782 = vadd.f32 %v691, %v778
        %v783 = vld [vmem:[%s4] sm:$0x1]
        %v785 = vlaneseq
        %v786 = vshrl.u32 %v785, 7
        %v787 = vsub.s32 0, %v786
        %v788 = vrot.slane %v783, %v787
        %v790 = vadd.f32 %v781, %v788
        %v791 = vadd.f32 %v782, %v788
        %vm795 = vcmask 1046528
        %v796 = vrot.slane %v227, 1
        %v797 = vrot.slane %v228, 1
        %v798 = vsel %vm795, %v796, %v797
        %v799 = vrot.slane %v229, 1
        %v800 = vsel %vm795, %v797, %v799
        %801 = vrot.lane.b32.xlu0 %v798, 124
        %v802 = vpop.permute.xlu0 %801
        %803 = vrot.lane.b32.xlu0 %v800, 124
        %v804 = vpop.permute.xlu0 %803
        %v807 = vadd.f32 %v790, %v802
        %v808 = vadd.f32 %v791, %v804
        %v809 = vmax.f32 %v807, 0.0
        %v810 = vmax.f32 %v808, 0.0
        %vm811 = vcmask 523264
        %812 = vst.msk [vmem:[%s217] sm:$0xff] %vm811, %v809
        %813 = vst.msk [vmem:[%s217 + $0x8] sm:$0xff] %vm811, %v810
        %s814 = sand.u32 %s137, 1
        %s815 = scalar_lea.sflag [#allocation4], %s814
        %s816 = sand.u32 %s137, 1
        %s817 = smul.addr %s816, 16
        %s818 = scalar_lea.vmem [#allocation3], %s817
        // Predicated region
        $region41: #{tpu_custom_call.1} parent=39 // pred_check
          %p819 = pneg %p147
        $region42: #{tpu_custom_call.1} parent=39 // pred_check_branch
          %821 = sbr.rel (%p819) target = $region44
        $region43: #{tpu_custom_call.1} parent=39 // pred_region
          %s823 = ssub.s32 256, 256
          %824 = vsyncadd %s815, %s823
          %s825 = smul.addr %s19, 2
          %s826 = smul.addr %s825, 128
          %s827 = scalar_lea.hbm %s5, %s826
          %s828 = sshll.u32 %s818, 4
          %s829 = int_to_ptr.vmem [resolvable:$true] %s828
          %834 = dma.vmem_to_hbm [thread:$0]  %s829, 256, %s827, %s815, 128, 128, 8
        $region44: #{tpu_custom_call.1} parent=39 // pred_fallthru
          _
      $region40: #{tpu_custom_call.1} parent=5 // pred_fallthru
        _
      %p835 = scmp.le.s32.totalorder 2, %s14
      // Predicated region
      $region45: #{tpu_custom_call.1} parent=5 // pred_check
        %p836 = pneg %p835
      $region46: #{tpu_custom_call.1} parent=5 // pred_check_branch
        %838 = sbr.rel (%p836) target = $region48
      $region47: #{tpu_custom_call.1} parent=5 // pred_region
        %s839 = ssub.s32 %s14, 2
        // Predicated region
        $region49: #{tpu_custom_call.1} parent=47 // pred_check
          %p840 = pneg %p153
        $region50: #{tpu_custom_call.1} parent=47 // pred_check_branch
          %842 = sbr.rel (%p840) target = $region52
        $region51: #{tpu_custom_call.1} parent=47 // pred_region
          %s843 = sand.u32 %s138, 1
          %s844 = scalar_lea.sflag [#allocation4], %s843
          %s845 = sand.u32 %s138, 1
          %s846 = smul.addr %s845, 16
          %s847 = scalar_lea.vmem [#allocation3], %s846
          %848 = dma.done %s844, 256
        $region52: #{tpu_custom_call.1} parent=47 // pred_fallthru
          _
      $region48: #{tpu_custom_call.1} parent=5 // pred_fallthru
        _
    $region6: #{tpu_custom_call.1} parent=1 // loop_footer
      %s18 = sadd.s32 1, %s14
    $region7: #{tpu_custom_call.1} parent=1 // loop_footer_branch
      %13 = sbr.rel target = $region3
    $region8: #{tpu_custom_call.1} parent=1 // loop_exit
      _
    %849 = vsyncpa [#allocation4], 1
    %s850 = scalar_lea.sflag [#allocation4], 1
    %851 = vsyncpa %s850, 1

</llo_original>
